<compile_context>
chip_gen: v6e
topology: v6e:2x2x1
jax: 0.10.0
libtpu: 0.0.40
codegen_flags: <defaults>
</compile_context>

<pallas_src>
import functools

import jax
import jax.numpy as jnp
from jax.experimental import pallas as pl
from jax.experimental.pallas import tpu as pltpu


def _round_up(x, m):
    return ((x + m - 1) // m) * m


def _tpu_params():
    """Best-effort per-chip parameters (VMEM capacity bytes, MXU width)."""
    vmem_cap = 128 * 2**20            # v5e / v6e default; v7x reports 64 MiB
    mxu = 256
    try:
        info = pltpu.get_tpu_info()
        vmem_cap = int(getattr(info, "vmem_capacity_bytes", vmem_cap))
        for name in ("mxu_column_size", "mxu_contracting_size", "mxu_size"):
            v = getattr(info, name, None)
            if v:
                mxu = int(v)
                break
    except Exception:
        pass
    return vmem_cap, mxu


def _vmem_limit(need_bytes, vmem_cap):
    # Leave headroom for compiler-internal scratch / semaphores: ~70% of the
    # physical capacity (≈45 MiB on v7x's 64 MiB, ≈90 MiB on v5e/v6e).
    hi = max(int(vmem_cap * 0.70), 32 * 2**20)
    return int(min(max(int(need_bytes * 1.25) + 4 * 2**20, 32 * 2**20), hi))


# -----------------------------------------------------------------------------
# Kernels
# -----------------------------------------------------------------------------
def _matmul_kernel(p_ref, w_ref, b_ref, o_ref):
    # Small-C path: one MXU matmul per tile, contraction = R*S*C.
    # p_ref: (TM, D_pad) bf16 im2col patches tile
    # w_ref: (D_pad, TK) bf16 weight tile (resident across the inner M axis)
    # b_ref: (1, TK)     f32  bias tile
    # o_ref: (TM, TK)    bf16 output tile
    acc = jnp.dot(p_ref[...], w_ref[...], preferred_element_type=jnp.float32)
    o_ref[...] = (acc + b_ref[...]).astype(o_ref.dtype)


def _tap_kernel(x_ref, w_ref, b_ref, o_ref, *, bases, tm):
    # Wide-C path: R matmuls, contraction = S*C, 16-aligned row slices.
    # x_ref: (1, ROWS, S*C) bf16 width-im2col'd slab (one batch, resident
    #        across the inner M axis and the K axis)
    # w_ref: (R, S*C, TK)   bf16 weight tile; w_ref[r] is a free index
    # b_ref: (1, TK)        f32
    # o_ref: (1, TM, TK)    bf16 output row block
    tk = o_ref.shape[2]
    row0 = pl.multiple_of(pl.program_id(2) * tm, tm)
    acc = jnp.zeros((tm, tk), jnp.float32)
    for r, base in enumerate(bases):            # R is small -> unrolled
        start = pl.multiple_of(row0 + base, 16)  # base % QQ == 0, QQ % 16 == 0
        xs = x_ref[0, pl.ds(start, tm), :]       # aligned view, no slab copy
        acc = acc + jnp.dot(xs, w_ref[r], preferred_element_type=jnp.float32)
    o_ref[0] = (acc + b_ref[...]).astype(o_ref.dtype)


# -----------------------------------------------------------------------------
# Path A: C < 128  -> wrapper-side im2col, single fat matmul per tile.
# -----------------------------------------------------------------------------
def _forward_im2col(dense, w_hwck, b_row, P, Q, stride, padding, dilation,
                    tm, tk, K, K_pad, vmem_cap):
    B, H, W, C = dense.shape
    R, S = w_hwck.shape[0], w_hwck.shape[1]
    str_h, str_w = stride
    pad_h, pad_w = padding
    dil_h, dil_w = dilation

    need_h = (P - 1) * str_h + (R - 1) * dil_h + 1
    need_w = (Q - 1) * str_w + (S - 1) * dil_w + 1
    x = jnp.pad(dense, ((0, 0),
                        (pad_h, max(0, need_h - H - pad_h)),
                        (pad_w, max(0, need_w - W - pad_w)),
                        (0, 0))).astype(jnp.bfloat16)

    # im2col: each (r, s) tap is one strided slice (cheap because C is small).
    pieces = [x[:, r * dil_h: r * dil_h + (P - 1) * str_h + 1: str_h,
                   s * dil_w: s * dil_w + (Q - 1) * str_w + 1: str_w, :]
              for r in range(R) for s in range(S)]
    patches = jnp.concatenate(pieces, axis=-1)        # (B, P, Q, R*S*C)

    D = R * S * C
    D_pad = _round_up(D, 8)
    M = B * P * Q
    M_pad = _round_up(M, tm)
    patches = jnp.pad(patches.reshape(M, D), ((0, M_pad - M), (0, D_pad - D)))

    w2 = jnp.pad(w_hwck.reshape(D, K),
                 ((0, D_pad - D), (0, K_pad - K))).astype(jnp.bfloat16)

    nk = K_pad // tk
    nm = M_pad // tm

    flops = 2 * M_pad * D_pad * K_pad
    bytes_accessed = (nk * M_pad * D_pad * 2 + D_pad * K_pad * 2
                      + K_pad * 4 + M_pad * K_pad * 2)
    vmem_need = 2 * (tm * max(D_pad, 128) * 2 + D_pad * tk * 2
                     + 8 * tk * 4 + tm * tk * 2) + tm * tk * 4

    out = pl.pallas_call(
        _matmul_kernel,
        out_shape=jax.ShapeDtypeStruct((M_pad, K_pad), jnp.bfloat16),
        grid_spec=pltpu.PrefetchScalarGridSpec(
            num_scalar_prefetch=0,
            # K-tile OUTERMOST: each weight tile is DMA'd once, patches stream.
            grid=(nk, nm),
            in_specs=[
                pl.BlockSpec((tm, D_pad), lambda k, m: (m, 0)),
                pl.BlockSpec((D_pad, tk), lambda k, m: (0, k)),
                pl.BlockSpec((1, tk), lambda k, m: (0, k)),
            ],
            out_specs=pl.BlockSpec((tm, tk), lambda k, m: (m, k)),
        ),
        compiler_params=pltpu.CompilerParams(
            dimension_semantics=("parallel", "parallel"),
            vmem_limit_bytes=_vmem_limit(vmem_need, vmem_cap)),
        cost_estimate=pl.CostEstimate(flops=flops, transcendentals=0,
                                      bytes_accessed=bytes_accessed),
    )(patches, w2, b_row)

    return out[:M, :K].astype(jnp.float32)            # (B*P*Q, K)


# -----------------------------------------------------------------------------
# Path B: C >= 128 -> resident slab, width taps folded into the contraction.
# -----------------------------------------------------------------------------
def _forward_resident_slab(dense, w_hwck, b_row, P, Q, stride, padding,
                           dilation, tm, tk, K, K_pad, vmem_cap):
    B, H, W, C = dense.shape
    R, S = w_hwck.shape[0], w_hwck.shape[1]
    str_h, str_w = stride
    pad_h, pad_w = padding
    dil_h, dil_w = dilation
    SC = S * C

    a_h = [(r * dil_h) // str_h for r in range(R)]
    ph_h = [(r * dil_h) % str_h for r in range(R)]
    PP = P + max(a_h)
    QQ = _round_up(Q, 16)          # 16-aligned -> every tap slice is a view
    m_out = P * QQ
    M_pad = _round_up(m_out, tm)

    need_h = PP * str_h
    need_w = (QQ - 1) * str_w + (S - 1) * dil_w + 1
    x = jnp.pad(dense, ((0, 0),
                        (pad_h, max(0, need_h - H - pad_h)),
                        (pad_w, max(0, need_w - W - pad_w)),
                        (0, 0)))[:, :need_h, :, :].astype(jnp.bfloat16)

    # Fold the S width taps into the lane (contraction) dim: the kernel then
    # needs only R matmuls with contraction S*C; all row slices are aligned.
    xw = jnp.concatenate(
        [x[:, :, s * dil_w: s * dil_w + (QQ - 1) * str_w + 1: str_w, :]
         for s in range(S)], axis=-1)                 # (B, need_h, QQ, S*C)
    if str_h > 1:                  # height stride phase shuffle (skip for s=1)
        xw = xw.reshape(B, PP, str_h, QQ, SC)
        xw = jnp.transpose(xw, (0, 2, 1, 3, 4))
    xw = xw.reshape(B, str_h * PP * QQ, SC)

    bases = tuple(ph_h[r] * (PP * QQ) + a_h[r] * QQ for r in range(R))
    rows_needed = max(bases) + M_pad
    rows_have = str_h * PP * QQ
    if rows_needed > rows_have:
        xw = jnp.pad(xw, ((0, 0), (0, rows_needed - rows_have), (0, 0)))
    ROWS = xw.shape[1]

    w3 = jnp.pad(w_hwck.reshape(R, SC, K),
                 ((0, 0), (0, 0), (0, K_pad - K))).astype(jnp.bfloat16)

    nk = K_pad // tk
    nm = M_pad // tm

    kernel = functools.partial(_tap_kernel, bases=bases, tm=tm)
    flops = 2 * B * M_pad * R * SC * K_pad
    bytes_accessed = (nk * B * ROWS * SC * 2 + R * SC * K_pad * 2
                      + K_pad * 4 + B * M_pad * K_pad * 2)
    vmem_need = (2 * ROWS * SC * 2 + 2 * R * SC * tk * 2 + 2 * 8 * tk * 4
                 + 2 * tm * tk * 2 + tm * tk * 4)

    out = pl.pallas_call(
        kernel,
        out_shape=jax.ShapeDtypeStruct((B, M_pad, K_pad), jnp.bfloat16),
        grid_spec=pltpu.PrefetchScalarGridSpec(
            num_scalar_prefetch=0,
            # K-tile outermost (weight DMA'd once), batch next (slab resident
            # across the inner M axis), M row-blocks innermost.
            grid=(nk, B, nm),
            in_specs=[
                # TODO(synk): pipeline_mode=pl.Buffered(1) on this resident
                # slab would save its second VMEM buffer on v7x.
                pl.BlockSpec((1, ROWS, SC), lambda k, b, m: (b, 0, 0)),
                pl.BlockSpec((R, SC, tk), lambda k, b, m: (0, 0, k)),
                pl.BlockSpec((1, tk), lambda k, b, m: (0, k)),
            ],
            out_specs=pl.BlockSpec((1, tm, tk), lambda k, b, m: (b, m, k)),
        ),
        compiler_params=pltpu.CompilerParams(
            dimension_semantics=("parallel", "parallel", "parallel"),
            vmem_limit_bytes=_vmem_limit(vmem_need, vmem_cap)),
        cost_estimate=pl.CostEstimate(flops=flops, transcendentals=0,
                                      bytes_accessed=bytes_accessed),
    )(xw, w3, b_row)

    out = out[:, :m_out, :].reshape(B, P, QQ, K_pad)[:, :, :Q, :K]
    return out.reshape(B * P * Q, K).astype(jnp.float32)


# -----------------------------------------------------------------------------
# NaiveSparseConv2d forward (wrapper).
# -----------------------------------------------------------------------------
def naive_sparse_conv2d(features, indices, spatial_shape, batch_size,
                        weight, bias, stride=(1, 1), padding=(0, 0),
                        dilation=(1, 1)):
    H, W = spatial_shape
    K, R, S, C = weight.shape
    str_h, str_w = stride
    pad_h, pad_w = padding
    dil_h, dil_w = dilation
    B = batch_size

    P = (H + 2 * pad_h - dil_h * (R - 1) - 1) // str_h + 1
    Q = (W + 2 * pad_w - dil_w * (S - 1) - 1) // str_w + 1
    assert P > 0 and Q > 0

    # TODO(synk): the data-dependent scatter (active sites -> dense grid) has
    # no clean BlockSpec/index_map expression; it stays in plain JAX
    # (duplicate indices resolve last-write-wins, same as the reference).
    dense = jnp.zeros((B, H, W, C), jnp.float32)
    dense = dense.at[indices[:, 0], indices[:, 1], indices[:, 2]].set(features)

    vmem_cap, mxu = _tpu_params()
    K_pad = _round_up(K, 128)
    # TODO(synk): for K << 128 the lane padding over-computes by 128/K; a
    # K-in-sublanes output packing would need a different kernel design.
    tk = 256 if (mxu >= 256 and K_pad % 256 == 0) else 128
    tm = 128 if tk == 256 else 256      # (TM, TK) f32 accumulator <= 128 KiB

    w_hwck = jnp.transpose(weight, (1, 2, 3, 0))      # [R, S, C, K]
    if bias is None:
        b_row = jnp.zeros((1, K_pad), jnp.float32)
    else:
        b_row = jnp.pad(bias.astype(jnp.float32).reshape(1, K),
                        ((0, 0), (0, K_pad - K)))

    if C < 128:
        out_features = _forward_im2col(
            dense, w_hwck, b_row, P, Q, (str_h, str_w), (pad_h, pad_w),
            (dil_h, dil_w), tm, tk, K, K_pad, vmem_cap)
    else:
        out_features = _forward_resident_slab(
            dense, w_hwck, b_row, P, Q, (str_h, str_w), (pad_h, pad_w),
            (dil_h, dil_w), tm, tk, K, K_pad, vmem_cap)

    # Output indices: full dense output grid (naive semantics).
    bb, pi, qi = jnp.meshgrid(jnp.arange(B, dtype=jnp.int32),
                              jnp.arange(P, dtype=jnp.int32),
                              jnp.arange(Q, dtype=jnp.int32), indexing="ij")
    out_indices = jnp.stack(
        [bb.reshape(-1), pi.reshape(-1), qi.reshape(-1)], axis=1)

    return out_features, out_indices, P, Q


# -----------------------------------------------------------------------------
# Plain-JAX reference and self-checks.
# -----------------------------------------------------------------------------
def _reference_dense_conv(features, indices, spatial_shape, batch_size,
                          weight, bias, stride, padding, dilation):
    H, W = spatial_shape
    K, R, S, C = weight.shape
    B = batch_size
    dense = jnp.zeros((B, H, W, C), jnp.float32)
    dense = dense.at[indices[:, 0], indices[:, 1], indices[:, 2]].set(features)
    w_hwio = jnp.transpose(weight, (1, 2, 3, 0))
    out = jax.lax.conv_general_dilated(
        dense, w_hwio, window_strides=stride,
        padding=[(padding[0], padding[0]), (padding[1], padding[1])],
        rhs_dilation=dilation,
        dimension_numbers=("NHWC", "HWIO", "NHWC"),
        precision=jax.lax.Precision.HIGHEST)
    if bias is not None:
        out = out + bias.reshape(1, 1, 1, K)
    return out


def _run_case(name, B, C, H, W, K, R, S, stride, padding, dilation,
              n_active, key):
    k_feat, k_w, k_b, k_idx = jax.random.split(key, 4)
    weight = jax.random.normal(k_w, (K, R, S, C), jnp.float32) * 0.1
    bias = jax.random.normal(k_b, (K,), jnp.float32) * 0.1

    flat = jax.random.choice(k_idx, B * H * W, shape=(n_active,),
                             replace=False).astype(jnp.int32)
    b_idx = flat // (H * W)
    h_idx = (flat % (H * W)) // W
    w_idx = flat % W
    indices = jnp.stack([b_idx, h_idx, w_idx], axis=1)
    features = jax.random.normal(k_feat, (n_active, C), jnp.float32)

    out_features, out_indices, P, Q = naive_sparse_conv2d(
        features, indices, (H, W), B, weight, bias,
        stride=stride, padding=padding, dilation=dilation)
    out_features = jax.block_until_ready(out_features)
    out_indices = jax.block_until_ready(out_indices)

    ref = _reference_dense_conv(features, indices, (H, W), B, weight, bias,
                                stride, padding, dilation).reshape(B * P * Q, K)
    assert out_features.shape == (B * P * Q, K)
    assert out_indices.shape == (B * P * Q, 3)
    max_ref = float(jnp.max(jnp.abs(ref)))
    max_err = float(jnp.max(jnp.abs(out_features - ref)))
    # bf16 inputs + f32 accumulation + bf16 output -> bf16-level tolerance.
    assert max_err <= 5e-2 * (1.0 + max_ref), (
        f"{name}: max abs err {max_err} (max |ref| {max_ref})")


if __name__ == "__main__":
    key = jax.random.PRNGKey(0)
    k1, k2, k3 = jax.random.split(key, 3)

    # 1) Typical small-C sparse-conv case (im2col path).
    _run_case("small_c", B=2, C=4, H=16, W=16, K=8, R=3, S=3,
              stride=(1, 1), padding=(1, 1), dilation=(1, 1),
              n_active=32, key=k1)

    # 2) Small-C with stride / dilation / asymmetric padding and odd spatial
    #    shapes (exercises the general patch-extraction math, review concern).
    _run_case("small_c_strided", B=2, C=6, H=15, W=13, K=10, R=3, S=2,
              stride=(2, 2), padding=(0, 1), dilation=(2, 1),
              n_active=64, key=k2)

    # 3) Wide-channel case (C >= 128): resident-slab per-row-tap path.
    _run_case("wide_c", B=2, C=128, H=12, W=12, K=128, R=3, S=3,
              stride=(1, 1), padding=(1, 1), dilation=(1, 1),
              n_active=96, key=k3)

    print("KERNEL_OK")
</pallas_src>

<mosaic_0001>
module attributes {stable_mosaic.version = 11 : i64} {
  func.func @_matmul_kernel(%arg0: i32, %arg1: i32, %arg2: memref<256x40xbf16, #tpu.memory_space<vmem>>, %arg3: memref<40x128xbf16, #tpu.memory_space<vmem>>, %arg4: memref<1x128xf32, #tpu.memory_space<vmem>>, %arg5: memref<256x128xbf16, #tpu.memory_space<vmem>>) attributes {dimension_semantics = [#tpu.dimension_semantics<parallel>, #tpu.dimension_semantics<parallel>], iteration_bounds = array<i64: 1, 2>, scalar_prefetch = 0 : i64, scratch_operands = 0 : i64, tpu.core_type = #tpu.core_type<tc>, window_params = [{transform_indices = @transform_0, window_bounds = array<i64: 256, 40>}, {transform_indices = @transform_1, window_bounds = array<i64: 40, 128>}, {transform_indices = @transform_2, window_bounds = array<i64: 1, 128>}, {transform_indices = @transform_3, window_bounds = array<i64: 256, 128>}]} {
    %c0 = arith.constant 0 : index
    %c0_0 = arith.constant 0 : index
    %0 = vector.load %arg2[%c0, %c0_0] : memref<256x40xbf16, #tpu.memory_space<vmem>>, vector<256x40xbf16>
    %c0_1 = arith.constant 0 : index
    %c0_2 = arith.constant 0 : index
    %1 = vector.load %arg3[%c0_1, %c0_2] : memref<40x128xbf16, #tpu.memory_space<vmem>>, vector<40x128xbf16>
    %cst = arith.constant dense<0.000000e+00> : vector<256x128xf32>
    %2 = tpu.matmul %0, %1, %cst {dimension_numbers = #tpu.dot_dimension_numbers<[1], [0], [0], [1], [0, 0, 1, 1], [], []>} : vector<256x40xbf16>, vector<40x128xbf16>, vector<256x128xf32> -> vector<256x128xf32>
    %c0_3 = arith.constant 0 : index
    %c0_4 = arith.constant 0 : index
    %3 = vector.load %arg4[%c0_3, %c0_4] : memref<1x128xf32, #tpu.memory_space<vmem>>, vector<1x128xf32>
    %4 = vector.broadcast %3 : vector<1x128xf32> to vector<256x128xf32>
    %5 = arith.addf %2, %4 : vector<256x128xf32>
    %6 = arith.truncf %5 : vector<256x128xf32> to vector<256x128xbf16>
    %c0_5 = arith.constant 0 : index
    %c0_6 = arith.constant 0 : index
    %7 = vector.load %arg5[%c0_5, %c0_6] : memref<256x128xbf16, #tpu.memory_space<vmem>>, vector<256x128xbf16>
    tpu.vector_store %arg5[%c0_5, %c0_6], %6 {strides = array<i32>} : memref<256x128xbf16, #tpu.memory_space<vmem>>, vector<256x128xbf16>,
    return
  }
  func.func @transform_0(%arg0: i32, %arg1: i32) -> (i32, i32) {
    %c0_i32 = arith.constant 0 : i32
    %c0_i32_0 = arith.constant 0 : i32
    return %arg1, %c0_i32 : i32, i32
  }
  func.func @transform_1(%arg0: i32, %arg1: i32) -> (i32, i32) {
    %c0_i32 = arith.constant 0 : i32
    %c0_i32_0 = arith.constant 0 : i32
    return %c0_i32, %arg0 : i32, i32
  }
  func.func @transform_2(%arg0: i32, %arg1: i32) -> (i32, i32) {
    %c0_i32 = arith.constant 0 : i32
    %c0_i32_0 = arith.constant 0 : i32
    return %c0_i32, %arg0 : i32, i32
  }
  func.func @transform_3(%arg0: i32, %arg1: i32) -> (i32, i32) {
    %c0_i32 = arith.constant 0 : i32
    return %arg1, %arg0 : i32, i32
  }
}

</mosaic_0001>

<llo_original>
// kernel: tpu_custom_call.1
$region0: #{tpu_custom_call.1}
  #allocation0 [shape = 'u32[]', space=smem, size = 0x4, offset = 0x4, fixed_abs, tag = 'smem constant byte address 0x4 - core index']
  #allocation1 [shape = 'u32[144,128]{1,0:T(1,128)}', space=vmem, size = 0x12000, scoped, tag = 'internal scratch']
  %s0 = inlined_call_operand.vmem [shape: bf16[512,40], index: 0, kind: input, shape index: {}]
  %s1 = inlined_call_operand.vmem [shape: bf16[40,128], index: 1, kind: input, shape index: {}]
  %s2 = inlined_call_operand.vmem [shape: f32[1,128], index: 2, kind: input, shape index: {}]
  %s3 = inlined_call_operand.hbm [shape: bf16[512,128], index: 3, kind: output, shape index: {}]
  %s4 = sld [smem:[#allocation0]]
  $region45: #{tpu_custom_call.1} parent=0
    _
  %s6 = ssub.s32 1, %s4
  %s7 = scalar_select 0, %s6, %s4
  $region1: #{tpu_custom_call.1} parent=0
    #allocation2 [shape = 'u8[131072]{0}', space=vmem, size = 0x20000, scoped, tag = 'output window, operand 0']
    #allocation3 [shape = 's32[2]{0}', space=sflag, size = 0x8, scoped, tag = 'scoped memory for tpu_custom_call.1']
    %8 = vsyncpa [#allocation3], 0
    %s9 = scalar_lea.sflag [#allocation3], 1
    %10 = vsyncpa %s9, 0
    loop: start=0, step=1, limit=4
    $region2: #{tpu_custom_call.1} parent=1 // loop_pre_header
      _
    $region3: #{tpu_custom_call.1} parent=1 // loop_header
      %s12 = sphi 0, %s16
      %p13 = scmp.ge.s32.totalorder %s12, 4
      %s19 = sphi 0, %s31
      %s20 = sphi 0, %s27
      %s21 = sphi 0, %s19
      %s22 = sphi 0, %s20
      %s23 = sphi 0, %s21
      %s24 = sphi 0, %s22
      %s34 = sphi 0, %s36
      %s37 = sphi 0, %s34
      %s38 = sphi 0, %s37
      %s54 = sphi 0, %s38
      %s60 = sphi 0, %s62
      %s63 = sphi 0, %s60
      %s64 = sphi 0, %s63
      %s80 = sphi 0, %s64
      %s86 = sphi 0, %s88
      %s89 = sphi 0, %s86
      %s90 = sphi 0, %s89
      %s106 = sphi 0, %s90
      %s114 = sphi 0, %s116
      %s117 = sphi 0, %s114
      %s118 = sphi 0, %s117
      %s134 = sphi 0, %s118
    $region4: #{tpu_custom_call.1} parent=1 // loop_header_branch
      %15 = sbr.rel (%p13) target = $region8
    $region5: #{tpu_custom_call.1} parent=1 // loop_body
      %s17 = ssub.s32 %s12, 1
      %s18 = ssub.s32 %s12, 2
      %s25 = sadd.s32 1, %s20
      %p26 = scmp.ge.s32.totalorder %s25, 2
      %s27 = scalar_select %p26, 0, %s25
      %s28 = sadd.s32 1, %s19
      %s29 = scalar_select %p26, %s28, %s19
      %p30 = scmp.ge.s32.totalorder %s29, 1
      %s31 = scalar_select %p30, 0, %s29
      %s32 = ssub.s32 %s20, %s27
      %p33 = scmp.eq.s32.totalorder %s32, 0
      %s35 = sadd.s32 %s34, 1
      %s36 = scalar_select %p33, %s34, %s35
      %p39 = pneg %p33
      %p40 = scmp.eq.s32.totalorder %s12, 1
      %p41 = por %p39, %p40
      %p42 = scmp.ne.s32.totalorder %s34, %s37
      %p43 = scmp.eq.s32.totalorder %s12, 0
      %p44 = por %p42, %p43
      %p45 = scmp.ne.s32.totalorder %s34, %s37
      %p46 = scmp.eq.s32.totalorder %s17, 1
      %p47 = por %p45, %p46
      %p48 = scmp.ne.s32.totalorder %s37, %s38
      %p49 = scmp.eq.s32.totalorder %s17, 0
      %p50 = por %p48, %p49
      %p51 = scmp.ne.s32.totalorder %s37, %s38
      %p52 = scmp.eq.s32.totalorder %s18, 1
      %p53 = por %p51, %p52
      %p55 = scmp.ne.s32.totalorder %s38, %s54
      %p56 = scmp.eq.s32.totalorder %s18, 0
      %p57 = por %p55, %p56
      %s58 = ssub.s32 %s19, %s31
      %p59 = scmp.eq.s32.totalorder %s58, 0
      %s61 = sadd.s32 %s60, 1
      %s62 = scalar_select %p59, %s60, %s61
      %p65 = pneg %p59
      %p66 = scmp.eq.s32.totalorder %s12, 1
      %p67 = por %p65, %p66
      %p68 = scmp.ne.s32.totalorder %s60, %s63
      %p69 = scmp.eq.s32.totalorder %s12, 0
      %p70 = por %p68, %p69
      %p71 = scmp.ne.s32.totalorder %s60, %s63
      %p72 = scmp.eq.s32.totalorder %s17, 1
      %p73 = por %p71, %p72
      %p74 = scmp.ne.s32.totalorder %s63, %s64
      %p75 = scmp.eq.s32.totalorder %s17, 0
      %p76 = por %p74, %p75
      %p77 = scmp.ne.s32.totalorder %s63, %s64
      %p78 = scmp.eq.s32.totalorder %s18, 1
      %p79 = por %p77, %p78
      %p81 = scmp.ne.s32.totalorder %s64, %s80
      %p82 = scmp.eq.s32.totalorder %s18, 0
      %p83 = por %p81, %p82
      %s84 = ssub.s32 %s19, %s31
      %p85 = scmp.eq.s32.totalorder %s84, 0
      %s87 = sadd.s32 %s86, 1
      %s88 = scalar_select %p85, %s86, %s87
      %p91 = pneg %p85
      %p92 = scmp.eq.s32.totalorder %s12, 1
      %p93 = por %p91, %p92
      %p94 = scmp.ne.s32.totalorder %s86, %s89
      %p95 = scmp.eq.s32.totalorder %s12, 0
      %p96 = por %p94, %p95
      %p97 = scmp.ne.s32.totalorder %s86, %s89
      %p98 = scmp.eq.s32.totalorder %s17, 1
      %p99 = por %p97, %p98
      %p100 = scmp.ne.s32.totalorder %s89, %s90
      %p101 = scmp.eq.s32.totalorder %s17, 0
      %p102 = por %p100, %p101
      %p103 = scmp.ne.s32.totalorder %s89, %s90
      %p104 = scmp.eq.s32.totalorder %s18, 1
      %p105 = por %p103, %p104
      %p107 = scmp.ne.s32.totalorder %s90, %s106
      %p108 = scmp.eq.s32.totalorder %s18, 0
      %p109 = por %p107, %p108
      %s110 = ssub.s32 %s20, %s27
      %s111 = ssub.s32 %s19, %s31
      %s112 = sor.u32 %s110, %s111
      %p113 = scmp.eq.s32.totalorder %s112, 0
      %s115 = sadd.s32 %s114, 1
      %s116 = scalar_select %p113, %s114, %s115
      %p119 = pneg %p113
      %p120 = scmp.eq.s32.totalorder %s12, 1
      %p121 = por %p119, %p120
      %p122 = scmp.ne.s32.totalorder %s114, %s117
      %p123 = scmp.eq.s32.totalorder %s12, 0
      %p124 = por %p122, %p123
      %p125 = scmp.ne.s32.totalorder %s114, %s117
      %p126 = scmp.eq.s32.totalorder %s17, 1
      %p127 = por %p125, %p126
      %p128 = scmp.ne.s32.totalorder %s117, %s118
      %p129 = scmp.eq.s32.totalorder %s17, 0
      %p130 = por %p128, %p129
      %p131 = scmp.ne.s32.totalorder %s117, %s118
      %p132 = scmp.eq.s32.totalorder %s18, 1
      %p133 = por %p131, %p132
      %p135 = scmp.ne.s32.totalorder %s118, %s134
      %p136 = scmp.eq.s32.totalorder %s18, 0
      %p137 = por %p135, %p136
      %p138 = scmp.le.s32.totalorder 1, %s12
      %p139 = scmp.lt.s32.totalorder %s12, 3
      %p140 = pnand %p138, %p139
      %p141 = pneg %p140
      // Predicated region
      $region9: #{tpu_custom_call.1} parent=5 // pred_check
        _
      $region10: #{tpu_custom_call.1} parent=5 // pred_check_branch
        %143 = sbr.rel (%p140) target = $region12
      $region11: #{tpu_custom_call.1} parent=5 // pred_region
        %s144 = ssub.s32 %s12, 1
        // Predicated region
        $region13: #{tpu_custom_call.1} parent=11 // pred_check
          %p145 = pneg %p76
        $region14: #{tpu_custom_call.1} parent=11 // pred_check_branch
          %147 = sbr.rel (%p145) target = $region16
        $region15: #{tpu_custom_call.1} parent=11 // pred_region
          %p148 = scmp.lt.s32.totalorder %s21, 0
          %s149 = scalar_select %p148, %s21, 0
          %s150 = smul.addr %s149, 4
          %s151 = scalar_lea.vmem %s1, %s150
        $region16: #{tpu_custom_call.1} parent=11 // pred_fallthru
          _
        // Predicated region
        $region17: #{tpu_custom_call.1} parent=11 // pred_check
          %p152 = pneg %p102
        $region18: #{tpu_custom_call.1} parent=11 // pred_check_branch
          %154 = sbr.rel (%p152) target = $region20
        $region19: #{tpu_custom_call.1} parent=11 // pred_region
          %p155 = scmp.lt.s32.totalorder %s21, 0
          %s156 = scalar_select %p155, %s21, 0
          %s157 = scalar_lea.vmem %s2, %s156
        $region20: #{tpu_custom_call.1} parent=11 // pred_fallthru
          _
      $region12: #{tpu_custom_call.1} parent=5 // pred_fallthru
        _
      %p158 = scmp.lt.s32.totalorder %s12, 2
      // Predicated region
      $region21: #{tpu_custom_call.1} parent=5 // pred_check
        %p159 = pneg %p158
      $region22: #{tpu_custom_call.1} parent=5 // pred_check_branch
        %161 = sbr.rel (%p159) target = $region24
      $region23: #{tpu_custom_call.1} parent=5 // pred_region
        // Predicated region
        $region25: #{tpu_custom_call.1} parent=23 // pred_check
          %p162 = pneg %p44
        $region26: #{tpu_custom_call.1} parent=23 // pred_check_branch
          %164 = sbr.rel (%p162) target = $region28
        $region27: #{tpu_custom_call.1} parent=23 // pred_region
          %s165 = smul.u32 32, %s20
          %p166 = scmp.lt.s32.totalorder %s165, 63
          %s167 = scalar_select %p166, %s165, 63
          %s168 = smul.addr %s167, 4
          %s169 = scalar_lea.vmem %s0, %s168
          %s170 = smul.u32 32, %s20
        $region28: #{tpu_custom_call.1} parent=23 // pred_fallthru
          _
      $region24: #{tpu_custom_call.1} parent=5 // pred_fallthru
        _
      %p171 = scmp.le.s32.totalorder 1, %s12
      %p172 = scmp.lt.s32.totalorder %s12, 3
      %p173 = pnand %p171, %p172
      %p174 = pneg %p173
      // Predicated region
      $region29: #{tpu_custom_call.1} parent=5 // pred_check
        _
      $region30: #{tpu_custom_call.1} parent=5 // pred_check_branch
        %176 = sbr.rel (%p173) target = $region32
      $region31: #{tpu_custom_call.1} parent=5 // pred_region
        %s177 = ssub.s32 %s12, 1
        %s178 = smul.u32 32, %s22
        %p179 = scmp.lt.s32.totalorder %s178, 63
        %s180 = scalar_select %p179, %s178, 63
        %s181 = smul.addr %s180, 4
        %s182 = scalar_lea.vmem %s0, %s181
        %p183 = pneg %p50
        %p184 = pneg %p47
        %p185 = scmp.lt.s32.totalorder %s21, 0
        %s186 = scalar_select %p185, %s21, 0
        %s187 = smul.addr %s186, 4
        %s188 = scalar_lea.vmem %s1, %s187
        %p189 = pneg %p76
        %p190 = pneg %p73
        %p191 = scmp.lt.s32.totalorder %s21, 0
        %s192 = scalar_select %p191, %s21, 0
        %s193 = scalar_lea.vmem %s2, %s192
        %p194 = pneg %p102
        %p195 = pneg %p99
        %p196 = pneg %p130
        %p197 = pneg %p127
        %s198 = sand.u32 %s117, 1
        %s199 = scalar_lea.sflag [#allocation3], %s198
        %s200 = sand.u32 %s117, 1
        %s201 = smul.addr %s200, 128
        %s202 = scalar_lea.vmem [#allocation2], %s201
        %s203 = smul.u32 32, %s22
        %p204 = scmp.lt.s32.totalorder %s203, 63
        %s205 = scalar_select %p204, %s203, 63
        %s206 = smul.addr %s205, 4
        %s207 = scalar_lea.vmem %s0, %s206
        %s208 = smul.u32 32, %s22
        %p209 = scmp.lt.s32.totalorder %s21, 0
        %s210 = scalar_select %p209, %s21, 0
        %s211 = smul.addr %s210, 4
        %s212 = scalar_lea.vmem %s1, %s211
        %p213 = scmp.lt.s32.totalorder %s21, 0
        %s214 = scalar_select %p213, %s21, 0
        %s215 = scalar_lea.vmem %s2, %s214
        %s216 = smul.u32 32, %s22
        %v218 = vld [vmem:[%s207] sm:$0xf]
        %v219 = vld [vmem:[%s207 + $0x4] sm:$0xf]
        %v220 = vld [vmem:[%s207 + $0x8] sm:$0xf]
        %v221 = vld [vmem:[%s207 + $0xc] sm:$0xf]
        %v222 = vld [vmem:[%s207 + $0x10] sm:$0xf]
        %v223 = vld [vmem:[%s207 + $0x14] sm:$0xf]
        %v224 = vld [vmem:[%s207 + $0x18] sm:$0xf]
        %v225 = vld [vmem:[%s207 + $0x1c] sm:$0xf]
        %v226 = vld [vmem:[%s207 + $0x20] sm:$0xf]
        %v227 = vld [vmem:[%s207 + $0x24] sm:$0xf]
        %v228 = vld [vmem:[%s207 + $0x28] sm:$0xf]
        %v229 = vld [vmem:[%s207 + $0x2c] sm:$0xf]
        %v230 = vld [vmem:[%s207 + $0x30] sm:$0xf]
        %v231 = vld [vmem:[%s207 + $0x34] sm:$0xf]
        %v232 = vld [vmem:[%s207 + $0x38] sm:$0xf]
        %v233 = vld [vmem:[%s207 + $0x3c] sm:$0xf]
        %v234 = vld [vmem:[%s207 + $0x40] sm:$0xf]
        %v235 = vld [vmem:[%s207 + $0x44] sm:$0xf]
        %v236 = vld [vmem:[%s207 + $0x48] sm:$0xf]
        %v237 = vld [vmem:[%s207 + $0x4c] sm:$0xf]
        %v238 = vld [vmem:[%s207 + $0x50] sm:$0xf]
        %v239 = vld [vmem:[%s207 + $0x54] sm:$0xf]
        %v240 = vld [vmem:[%s207 + $0x58] sm:$0xf]
        %v241 = vld [vmem:[%s207 + $0x5c] sm:$0xf]
        %v242 = vld [vmem:[%s207 + $0x60] sm:$0xf]
        %v243 = vld [vmem:[%s207 + $0x64] sm:$0xf]
        %v244 = vld [vmem:[%s207 + $0x68] sm:$0xf]
        %v245 = vld [vmem:[%s207 + $0x6c] sm:$0xf]
        %v246 = vld [vmem:[%s207 + $0x70] sm:$0xf]
        %v247 = vld [vmem:[%s207 + $0x74] sm:$0xf]
        %v248 = vld [vmem:[%s207 + $0x78] sm:$0xf]
        %v249 = vld [vmem:[%s207 + $0x7c] sm:$0xf]
        %v250 = vld [vmem:[%s212] sm:$0xf]
        %v251 = vld [vmem:[%s212 + $0x4] sm:$0xf]
        %v252 = vld [vmem:[%s212 + $0x8] sm:$0xf]
        %v253 = vld [vmem:[%s212 + $0xc] sm:$0xf]
        %v254 = vld [vmem:[%s212 + $0x10] sm:$0xf]
        %v255 = vld [vmem:[%s215] sm:$0x1]
        %v257 = vlaneseq
        %v258 = vshrl.u32 %v257, 7
        %v259 = vsub.s32 0, %v258
        %v260 = vrot.slane %v255, %v259
        %v294 = vunpack.c.l.b16 %v218
        %v295 = vunpack.c.l.b16 %v219
        %v296 = vunpack.c.l.b16 %v220
        %v297 = vunpack.c.l.b16 %v221
        %v298 = vunpack.c.l.b16 %v222
        %v299 = vunpack.c.l.b16 %v223
        %v300 = vunpack.c.l.b16 %v224
        %v301 = vunpack.c.l.b16 %v225
        %v302 = vunpack.c.l.b16 %v226
        %v303 = vunpack.c.l.b16 %v227
        %v304 = vunpack.c.l.b16 %v228
        %v305 = vunpack.c.l.b16 %v229
        %v306 = vunpack.c.l.b16 %v230
        %v307 = vunpack.c.l.b16 %v231
        %v308 = vunpack.c.l.b16 %v232
        %v309 = vunpack.c.l.b16 %v233
        %v310 = vunpack.c.l.b16 %v234
        %v311 = vunpack.c.l.b16 %v235
        %v312 = vunpack.c.l.b16 %v236
        %v313 = vunpack.c.l.b16 %v237
        %v314 = vunpack.c.l.b16 %v238
        %v315 = vunpack.c.l.b16 %v239
        %v316 = vunpack.c.l.b16 %v240
        %v317 = vunpack.c.l.b16 %v241
        %v318 = vunpack.c.l.b16 %v242
        %v319 = vunpack.c.l.b16 %v243
        %v320 = vunpack.c.l.b16 %v244
        %v321 = vunpack.c.l.b16 %v245
        %v322 = vunpack.c.l.b16 %v246
        %v323 = vunpack.c.l.b16 %v247
        %v324 = vunpack.c.l.b16 %v248
        %v325 = vunpack.c.l.b16 %v249
        %v326 = vpack.c.b16 %v295, %v294
        %v327 = vpack.c.b16 %v297, %v296
        %v328 = vpack.c.b16 %v299, %v298
        %v329 = vpack.c.b16 %v301, %v300
        %v330 = vpack.c.b16 %v303, %v302
        %v331 = vpack.c.b16 %v305, %v304
        %v332 = vpack.c.b16 %v307, %v306
        %v333 = vpack.c.b16 %v309, %v308
        %v334 = vpack.c.b16 %v311, %v310
        %v335 = vpack.c.b16 %v313, %v312
        %v336 = vpack.c.b16 %v315, %v314
        %v337 = vpack.c.b16 %v317, %v316
        %v338 = vpack.c.b16 %v319, %v318
        %v339 = vpack.c.b16 %v321, %v320
        %v340 = vpack.c.b16 %v323, %v322
        %v341 = vpack.c.b16 %v325, %v324
        %v347 = vunpack.c.l.b16 %v250
        %v348 = vunpack.c.l.b16 %v251
        %v349 = vunpack.c.l.b16 %v252
        %v350 = vunpack.c.l.b16 %v253
        %v351 = vunpack.c.l.b16 %v254
        %v352 = vpack.c.b16 %v348, %v347
        %v353 = vpack.c.b16 %v350, %v349
        %v354 = vpack.c.b16 %v351, %v351
        %vm357 = vcmask 326656
        %v359 = vsel %vm357, %v326, 0
        %v362 = vsel %vm357, %v327, 0
        %v365 = vsel %vm357, %v328, 0
        %v368 = vsel %vm357, %v329, 0
        %v371 = vsel %vm357, %v330, 0
        %v374 = vsel %vm357, %v331, 0
        %v377 = vsel %vm357, %v332, 0
        %v380 = vsel %vm357, %v333, 0
        %v383 = vsel %vm357, %v334, 0
        %v386 = vsel %vm357, %v335, 0
        %v389 = vsel %vm357, %v336, 0
        %v392 = vsel %vm357, %v337, 0
        %v395 = vsel %vm357, %v338, 0
        %v398 = vsel %vm357, %v339, 0
        %v401 = vsel %vm357, %v340, 0
        %v404 = vsel %vm357, %v341, 0
        %vm406 = vcmask 1043456
        %v408 = vsel %vm406, %v354, 0
        %410 = vmatprep.subr.bf16.mxu0 0
        %411 = vmatpush1.bf16.msra.mxu0 0
        %412 = vmatprep.subr.bf16.mxu0 0
        %413 = vmatpush1.bf16.msra.mxu0 0
        %414 = vmatprep.subr.bf16.mxu0 0
        %415 = vmatpush1.bf16.msra.mxu0 0
        %416 = vmatprep.subr.bf16.mxu0 0
        %417 = vmatpush1.bf16.msra.mxu0 0
        %418 = vmatprep.subr.bf16.mxu0 0
        %419 = vmatpush1.bf16.msra.mxu0 0
        %420 = vmatprep.subr.bf16.mxu0 0
        %421 = vmatpush1.bf16.msra.mxu0 %v408
        %422 = vmatprep.subr.bf16.mxu0 0
        %423 = vmatpush1.bf16.msra.mxu0 %v353
        %424 = vmatprep.subr.bf16.mxu0 0
        %425 = vmatpush1.bf16.msra.mxu0 %v352
        %426 = vmatprep.subr.bf16.mxu0 0
        %427 = vmatpush2.bf16.msra.mxu0 0
        %428 = vmatprep.subr.bf16.mxu0 0
        %429 = vmatpush2.bf16.msra.mxu0 0
        %430 = vmatprep.subr.bf16.mxu0 0
        %431 = vmatpush2.bf16.msra.mxu0 0
        %432 = vmatprep.subr.bf16.mxu0 0
        %433 = vmatpush2.bf16.msra.mxu0 0
        %434 = vmatprep.subr.bf16.mxu0 0
        %435 = vmatpush2.bf16.msra.mxu0 0
        %436 = vmatprep.subr.bf16.mxu0 0
        %437 = vmatpush2.bf16.msra.mxu0 0
        %438 = vmatprep.subr.bf16.mxu0 0
        %439 = vmatpush2.bf16.msra.mxu0 0
        %440 = vmatprep.subr.bf16.mxu0 0
        %441 = vmatpush2.bf16.msra.mxu0 0
        %442 = vmatprep.mubr.bf16.mxu0 0
        %443 = vmatmul.mubr.bf16.gmra.mxu0 %v359
        %v444 = vpop.f32.mrf.mxu0
        %v445 = vadd.f32 %v260, %v444
        %v446 = vpop.f32.mrf.mxu0
        %v447 = vpop.f32.mrf.mxu0
        %v448 = vadd.f32 %v260, %v447
        %v449 = vpop.f32.mrf.mxu0
        %450 = vmatprep.mubr.bf16.mxu0 0
        %451 = vmatmul.mubr.bf16.gmra.mxu0 %v362
        %v452 = vpop.f32.mrf.mxu0
        %v453 = vadd.f32 %v260, %v452
        %v454 = vpop.f32.mrf.mxu0
        %v455 = vpop.f32.mrf.mxu0
        %v456 = vadd.f32 %v260, %v455
        %v457 = vpop.f32.mrf.mxu0
        %458 = vmatprep.mubr.bf16.mxu0 0
        %459 = vmatmul.mubr.bf16.gmra.mxu0 %v365
        %v460 = vpop.f32.mrf.mxu0
        %v461 = vadd.f32 %v260, %v460
        %v462 = vpop.f32.mrf.mxu0
        %v463 = vpop.f32.mrf.mxu0
        %v464 = vadd.f32 %v260, %v463
        %v465 = vpop.f32.mrf.mxu0
        %466 = vmatprep.mubr.bf16.mxu0 0
        %467 = vmatmul.mubr.bf16.gmra.mxu0 %v368
        %v468 = vpop.f32.mrf.mxu0
        %v469 = vadd.f32 %v260, %v468
        %v470 = vpop.f32.mrf.mxu0
        %v471 = vpop.f32.mrf.mxu0
        %v472 = vadd.f32 %v260, %v471
        %v473 = vpop.f32.mrf.mxu0
        %474 = vmatprep.mubr.bf16.mxu0 0
        %475 = vmatmul.mubr.bf16.gmra.mxu0 %v371
        %v476 = vpop.f32.mrf.mxu0
        %v477 = vadd.f32 %v260, %v476
        %v478 = vpop.f32.mrf.mxu0
        %v479 = vpop.f32.mrf.mxu0
        %v480 = vadd.f32 %v260, %v479
        %v481 = vpop.f32.mrf.mxu0
        %482 = vmatprep.mubr.bf16.mxu0 0
        %483 = vmatmul.mubr.bf16.gmra.mxu0 %v374
        %v484 = vpop.f32.mrf.mxu0
        %v485 = vadd.f32 %v260, %v484
        %v486 = vpop.f32.mrf.mxu0
        %v487 = vpop.f32.mrf.mxu0
        %v488 = vadd.f32 %v260, %v487
        %v489 = vpop.f32.mrf.mxu0
        %490 = vmatprep.mubr.bf16.mxu0 0
        %491 = vmatmul.mubr.bf16.gmra.mxu0 %v377
        %v492 = vpop.f32.mrf.mxu0
        %v493 = vadd.f32 %v260, %v492
        %v494 = vpop.f32.mrf.mxu0
        %v495 = vpop.f32.mrf.mxu0
        %v496 = vadd.f32 %v260, %v495
        %v497 = vpop.f32.mrf.mxu0
        %498 = vmatprep.mubr.bf16.mxu0 0
        %499 = vmatmul.mubr.bf16.gmra.mxu0 %v380
        %v500 = vpop.f32.mrf.mxu0
        %v501 = vadd.f32 %v260, %v500
        %v502 = vpop.f32.mrf.mxu0
        %v503 = vpop.f32.mrf.mxu0
        %v504 = vadd.f32 %v260, %v503
        %v505 = vpop.f32.mrf.mxu0
        %506 = vmatprep.mubr.bf16.mxu0 0
        %507 = vmatmul.mubr.bf16.gmra.mxu0 %v383
        %v508 = vpop.f32.mrf.mxu0
        %v509 = vadd.f32 %v260, %v508
        %v510 = vpop.f32.mrf.mxu0
        %v511 = vpop.f32.mrf.mxu0
        %v512 = vadd.f32 %v260, %v511
        %v513 = vpop.f32.mrf.mxu0
        %514 = vmatprep.mubr.bf16.mxu0 0
        %515 = vmatmul.mubr.bf16.gmra.mxu0 %v386
        %v516 = vpop.f32.mrf.mxu0
        %v517 = vadd.f32 %v260, %v516
        %v518 = vpop.f32.mrf.mxu0
        %v519 = vpop.f32.mrf.mxu0
        %v520 = vadd.f32 %v260, %v519
        %v521 = vpop.f32.mrf.mxu0
        %522 = vmatprep.mubr.bf16.mxu0 0
        %523 = vmatmul.mubr.bf16.gmra.mxu0 %v389
        %v524 = vpop.f32.mrf.mxu0
        %v525 = vadd.f32 %v260, %v524
        %v526 = vpop.f32.mrf.mxu0
        %v527 = vpop.f32.mrf.mxu0
        %v528 = vadd.f32 %v260, %v527
        %v529 = vpop.f32.mrf.mxu0
        %530 = vmatprep.mubr.bf16.mxu0 0
        %531 = vmatmul.mubr.bf16.gmra.mxu0 %v392
        %v532 = vpop.f32.mrf.mxu0
        %v533 = vadd.f32 %v260, %v532
        %v534 = vpop.f32.mrf.mxu0
        %v535 = vpop.f32.mrf.mxu0
        %v536 = vadd.f32 %v260, %v535
        %v537 = vpop.f32.mrf.mxu0
        %538 = vmatprep.mubr.bf16.mxu0 0
        %539 = vmatmul.mubr.bf16.gmra.mxu0 %v395
        %v540 = vpop.f32.mrf.mxu0
        %v541 = vadd.f32 %v260, %v540
        %v542 = vpop.f32.mrf.mxu0
        %v543 = vpop.f32.mrf.mxu0
        %v544 = vadd.f32 %v260, %v543
        %v545 = vpop.f32.mrf.mxu0
        %546 = vmatprep.mubr.bf16.mxu0 0
        %547 = vmatmul.mubr.bf16.gmra.mxu0 %v398
        %v548 = vpop.f32.mrf.mxu0
        %v549 = vadd.f32 %v260, %v548
        %v550 = vpop.f32.mrf.mxu0
        %v551 = vpop.f32.mrf.mxu0
        %v552 = vadd.f32 %v260, %v551
        %v553 = vpop.f32.mrf.mxu0
        %554 = vmatprep.mubr.bf16.mxu0 0
        %555 = vmatmul.mubr.bf16.gmra.mxu0 %v401
        %v556 = vpop.f32.mrf.mxu0
        %v557 = vadd.f32 %v260, %v556
        %v558 = vpop.f32.mrf.mxu0
        %v559 = vpop.f32.mrf.mxu0
        %v560 = vadd.f32 %v260, %v559
        %v561 = vpop.f32.mrf.mxu0
        %562 = vmatprep.mubr.bf16.mxu0 0
        %563 = vmatmul.mubr.bf16.gmra.mxu0 %v404
        %v564 = vpop.f32.mrf.mxu0
        %v565 = vadd.f32 %v260, %v564
        %v566 = vpop.f32.mrf.mxu0
        %v567 = vpop.f32.mrf.mxu0
        %v568 = vadd.f32 %v260, %v567
        %v569 = vpop.f32.mrf.mxu0
        %570 = vdwg.mxu0
        %v571 = vpack.c.bf16 %v448, %v445
        %v572 = vpack.c.bf16 %v456, %v453
        %v573 = vpack.c.bf16 %v464, %v461
        %v574 = vpack.c.bf16 %v472, %v469
        %v575 = vpack.c.bf16 %v480, %v477
        %v576 = vpack.c.bf16 %v488, %v485
        %v577 = vpack.c.bf16 %v496, %v493
        %v578 = vpack.c.bf16 %v504, %v501
        %v579 = vpack.c.bf16 %v512, %v509
        %v580 = vpack.c.bf16 %v520, %v517
        %v581 = vpack.c.bf16 %v528, %v525
        %v582 = vpack.c.bf16 %v536, %v533
        %v583 = vpack.c.bf16 %v544, %v541
        %v584 = vpack.c.bf16 %v552, %v549
        %v585 = vpack.c.bf16 %v560, %v557
        %v586 = vpack.c.bf16 %v568, %v565
        %v603 = vunpack.c.l.b16 %v571
        %v604 = vunpack.c.h.b16 %v571
        %v605 = vunpack.c.l.b16 %v572
        %v606 = vunpack.c.h.b16 %v572
        %v607 = vunpack.c.l.b16 %v573
        %v608 = vunpack.c.h.b16 %v573
        %v609 = vunpack.c.l.b16 %v574
        %v610 = vunpack.c.h.b16 %v574
        %v611 = vunpack.c.l.b16 %v575
        %v612 = vunpack.c.h.b16 %v575
        %v613 = vunpack.c.l.b16 %v576
        %v614 = vunpack.c.h.b16 %v576
        %v615 = vunpack.c.l.b16 %v577
        %v616 = vunpack.c.h.b16 %v577
        %v617 = vunpack.c.l.b16 %v578
        %v618 = vunpack.c.h.b16 %v578
        %v619 = vunpack.c.l.b16 %v579
        %v620 = vunpack.c.h.b16 %v579
        %v621 = vunpack.c.l.b16 %v580
        %v622 = vunpack.c.h.b16 %v580
        %v623 = vunpack.c.l.b16 %v581
        %v624 = vunpack.c.h.b16 %v581
        %v625 = vunpack.c.l.b16 %v582
        %v626 = vunpack.c.h.b16 %v582
        %v627 = vunpack.c.l.b16 %v583
        %v628 = vunpack.c.h.b16 %v583
        %v629 = vunpack.c.l.b16 %v584
        %v630 = vunpack.c.h.b16 %v584
        %v631 = vunpack.c.l.b16 %v585
        %v632 = vunpack.c.h.b16 %v585
        %v633 = vunpack.c.l.b16 %v586
        %v634 = vunpack.c.h.b16 %v586
        %v635 = vpack.c.b16 %v603, %v603
        %v636 = vpack.c.b16 %v604, %v604
        %v637 = vpack.c.b16 %v605, %v605
        %v638 = vpack.c.b16 %v606, %v606
        %v639 = vpack.c.b16 %v607, %v607
        %v640 = vpack.c.b16 %v608, %v608
        %v641 = vpack.c.b16 %v609, %v609
        %v642 = vpack.c.b16 %v610, %v610
        %v643 = vpack.c.b16 %v611, %v611
        %v644 = vpack.c.b16 %v612, %v612
        %v645 = vpack.c.b16 %v613, %v613
        %v646 = vpack.c.b16 %v614, %v614
        %v647 = vpack.c.b16 %v615, %v615
        %v648 = vpack.c.b16 %v616, %v616
        %v649 = vpack.c.b16 %v617, %v617
        %v650 = vpack.c.b16 %v618, %v618
        %v651 = vpack.c.b16 %v619, %v619
        %v652 = vpack.c.b16 %v620, %v620
        %v653 = vpack.c.b16 %v621, %v621
        %v654 = vpack.c.b16 %v622, %v622
        %v655 = vpack.c.b16 %v623, %v623
        %v656 = vpack.c.b16 %v624, %v624
        %v657 = vpack.c.b16 %v625, %v625
        %v658 = vpack.c.b16 %v626, %v626
        %v659 = vpack.c.b16 %v627, %v627
        %v660 = vpack.c.b16 %v628, %v628
        %v661 = vpack.c.b16 %v629, %v629
        %v662 = vpack.c.b16 %v630, %v630
        %v663 = vpack.c.b16 %v631, %v631
        %v664 = vpack.c.b16 %v632, %v632
        %v665 = vpack.c.b16 %v633, %v633
        %v666 = vpack.c.b16 %v634, %v634
        %699 = vst [vmem:[%s202] sm:$0xf] %v635
        %700 = vst [vmem:[%s202 + $0x4] sm:$0xf] %v636
        %701 = vst [vmem:[%s202 + $0x8] sm:$0xf] %v637
        %702 = vst [vmem:[%s202 + $0xc] sm:$0xf] %v638
        %703 = vst [vmem:[%s202 + $0x10] sm:$0xf] %v639
        %704 = vst [vmem:[%s202 + $0x14] sm:$0xf] %v640
        %705 = vst [vmem:[%s202 + $0x18] sm:$0xf] %v641
        %706 = vst [vmem:[%s202 + $0x1c] sm:$0xf] %v642
        %707 = vst [vmem:[%s202 + $0x20] sm:$0xf] %v643
        %708 = vst [vmem:[%s202 + $0x24] sm:$0xf] %v644
        %709 = vst [vmem:[%s202 + $0x28] sm:$0xf] %v645
        %710 = vst [vmem:[%s202 + $0x2c] sm:$0xf] %v646
        %711 = vst [vmem:[%s202 + $0x30] sm:$0xf] %v647
        %712 = vst [vmem:[%s202 + $0x34] sm:$0xf] %v648
        %713 = vst [vmem:[%s202 + $0x38] sm:$0xf] %v649
        %714 = vst [vmem:[%s202 + $0x3c] sm:$0xf] %v650
        %715 = vst [vmem:[%s202 + $0x40] sm:$0xf] %v651
        %716 = vst [vmem:[%s202 + $0x44] sm:$0xf] %v652
        %717 = vst [vmem:[%s202 + $0x48] sm:$0xf] %v653
        %718 = vst [vmem:[%s202 + $0x4c] sm:$0xf] %v654
        %719 = vst [vmem:[%s202 + $0x50] sm:$0xf] %v655
        %720 = vst [vmem:[%s202 + $0x54] sm:$0xf] %v656
        %721 = vst [vmem:[%s202 + $0x58] sm:$0xf] %v657
        %722 = vst [vmem:[%s202 + $0x5c] sm:$0xf] %v658
        %723 = vst [vmem:[%s202 + $0x60] sm:$0xf] %v659
        %724 = vst [vmem:[%s202 + $0x64] sm:$0xf] %v660
        %725 = vst [vmem:[%s202 + $0x68] sm:$0xf] %v661
        %726 = vst [vmem:[%s202 + $0x6c] sm:$0xf] %v662
        %727 = vst [vmem:[%s202 + $0x70] sm:$0xf] %v663
        %728 = vst [vmem:[%s202 + $0x74] sm:$0xf] %v664
        %729 = vst [vmem:[%s202 + $0x78] sm:$0xf] %v665
        %730 = vst [vmem:[%s202 + $0x7c] sm:$0xf] %v666
        %s731 = sand.u32 %s117, 1
        %s732 = scalar_lea.sflag [#allocation3], %s731
        %s733 = sand.u32 %s117, 1
        %s734 = smul.addr %s733, 128
        %s735 = scalar_lea.vmem [#allocation2], %s734
        // Predicated region
        $region33: #{tpu_custom_call.1} parent=31 // pred_check
          %p736 = pneg %p127
        $region34: #{tpu_custom_call.1} parent=31 // pred_check_branch
          %738 = sbr.rel (%p736) target = $region36
        $region35: #{tpu_custom_call.1} parent=31 // pred_region
          %s739 = smul.u32 32, %s22
          %s741 = ssub.s32 2048, 2048
          %742 = vsyncadd %s732, %s741
          %s743 = sadd.s32 %s21, %s739
          %s744 = smul.addr %s743, 64
          %s745 = scalar_lea.hbm %s3, %s744
          %s746 = sshll.u32 %s735, 4
          %s747 = int_to_ptr.vmem [resolvable:$true] %s746
          %752 = dma.vmem_to_hbm [thread:$0]  %s747, 2048, %s745, %s732, 64, 64, 4
        $region36: #{tpu_custom_call.1} parent=31 // pred_fallthru
          _
      $region32: #{tpu_custom_call.1} parent=5 // pred_fallthru
        _
      %p753 = scmp.le.s32.totalorder 2, %s12
      // Predicated region
      $region37: #{tpu_custom_call.1} parent=5 // pred_check
        %p754 = pneg %p753
      $region38: #{tpu_custom_call.1} parent=5 // pred_check_branch
        %756 = sbr.rel (%p754) target = $region40
      $region39: #{tpu_custom_call.1} parent=5 // pred_region
        %s757 = ssub.s32 %s12, 2
        // Predicated region
        $region41: #{tpu_custom_call.1} parent=39 // pred_check
          %p758 = pneg %p133
        $region42: #{tpu_custom_call.1} parent=39 // pred_check_branch
          %760 = sbr.rel (%p758) target = $region44
        $region43: #{tpu_custom_call.1} parent=39 // pred_region
          %s761 = sand.u32 %s118, 1
          %s762 = scalar_lea.sflag [#allocation3], %s761
          %s763 = sand.u32 %s118, 1
          %s764 = smul.addr %s763, 128
          %s765 = scalar_lea.vmem [#allocation2], %s764
          %766 = dma.done %s762, 2048
        $region44: #{tpu_custom_call.1} parent=39 // pred_fallthru
          _
      $region40: #{tpu_custom_call.1} parent=5 // pred_fallthru
        _
    $region6: #{tpu_custom_call.1} parent=1 // loop_footer
      %s16 = sadd.s32 1, %s12
    $region7: #{tpu_custom_call.1} parent=1 // loop_footer_branch
      %11 = sbr.rel target = $region3
    $region8: #{tpu_custom_call.1} parent=1 // loop_exit
      _
    %767 = vsyncpa [#allocation3], 1
    %s768 = scalar_lea.sflag [#allocation3], 1
    %769 = vsyncpa %s768, 1

</llo_original>
